<compile_context>
chip_gen: v7x
topology: tpu7x:2x2x1
jax: 0.10.0
libtpu: 0.0.40
codegen_flags: <defaults>
</compile_context>

<pallas_src>
import functools

import jax
import jax.numpy as jnp
from jax.experimental import pallas as pl
from jax.experimental.pallas import tpu as pltpu


def _round_up(x, m):
    return ((x + m - 1) // m) * m


def _cdiv(a, b):
    return (a + b - 1) // b


def _linear_kernel(x_ref, w_ref, b_ref, o_ref):
    # x_ref: (TM, K_pad), w_ref: (K_pad, N_pad) == W^T padded, b_ref: (8, N_pad),
    # o_ref: (TM, N_pad).  Plain lane-dense MXU matmul with f32 accumulation.
    acc = jnp.dot(x_ref[...], w_ref[...], preferred_element_type=jnp.float32)
    o_ref[...] = (acc + b_ref[0:1, :]).astype(o_ref.dtype)


@functools.partial(jax.jit, static_argnames=("tm",))
def linear_pallas(x2d, w, b, *, tm=1024):
    """x2d: (M, K), w: (N, K) torch (out, in) layout, b: (N,). Returns (M, N)."""
    M, K = x2d.shape
    N = w.shape[0]

    # Lane-dense padding for both the contraction dim and the output dim.
    K_pad = _round_up(K, 128)   # 300 -> 384
    N_pad = _round_up(N, 128)   # 300 -> 384

    # Balanced row tiles; force >= 2 grid steps (when M allows) so the
    # "parallel" grid axis shards across v7x's two TensorCores.
    num_tiles = _cdiv(M, tm)
    if num_tiles < 2 and M > 8:
        num_tiles = 2
    num_tiles = max(num_tiles, 1)
    TM = _round_up(_cdiv(M, num_tiles), 8)
    M_pad = num_tiles * TM

    # Zero padding is numerically benign (padded K columns contribute 0 MACs,
    # padded rows / output lanes are sliced off below).
    if M_pad != M or K_pad != K:
        x_p = jnp.pad(x2d, ((0, M_pad - M), (0, K_pad - K)))
    else:
        x_p = x2d

    # One-time host-side transpose of the small 300x300 weight: (N, K) -> (K, N),
    # then pad to (K_pad, N_pad) so the kernel does a plain x @ W^T matmul with a
    # lane-dense, VMEM-resident RHS.
    w_t = w.T
    if K_pad != K or N_pad != N:
        w_p = jnp.pad(w_t, ((0, K_pad - K), (0, N_pad - N)))
    else:
        w_p = w_t

    b_p = jnp.pad(b, ((0, N_pad - N),)) if N_pad != N else b
    b_p = jnp.broadcast_to(b_p.reshape(1, N_pad), (8, N_pad))

    grid = (num_tiles,)

    itemsize = jnp.dtype(x2d.dtype).itemsize
    cost = pl.CostEstimate(
        flops=2 * M_pad * K_pad * N_pad,
        transcendentals=0,
        bytes_accessed=(M_pad * K_pad + K_pad * N_pad + 8 * N_pad
                        + M_pad * N_pad) * itemsize,
    )

    out = pl.pallas_call(
        _linear_kernel,
        out_shape=jax.ShapeDtypeStruct((M_pad, N_pad), x2d.dtype),
        grid=grid,
        in_specs=[
            pl.BlockSpec((TM, K_pad), lambda i: (i, 0)),      # x row tile (pipelined)
            pl.BlockSpec((K_pad, N_pad), lambda i: (0, 0)),   # W^T, VMEM-resident
            pl.BlockSpec((8, N_pad), lambda i: (0, 0)),       # bias, VMEM-resident
        ],
        out_specs=pl.BlockSpec((TM, N_pad), lambda i: (i, 0)),
        compiler_params=pltpu.CompilerParams(
            dimension_semantics=("parallel",),
        ),
        cost_estimate=cost,
    )(x_p, w_p, b_p)

    # Balanced tiles usually give M_pad == M; only the lane slice (384 -> 300)
    # remains, which XLA fuses with the consumer reshape.
    if M_pad != M:
        out = out[:M]
    return out[:, :N]


def transformer_forward(x, w, b):
    """Replicates TRANSFORMER.forward: applies Linear(300, 300) to the last dim."""
    lead = x.shape[:-1]
    x2d = x.reshape(-1, x.shape[-1])
    y2d = linear_pallas(x2d, w, b)
    return y2d.reshape(*lead, w.shape[0])


if __name__ == "__main__":
    key = jax.random.PRNGKey(0)
    kx, kw, kb = jax.random.split(key, 3)

    batch, seq, feat = 2, 8, 300
    x = jax.random.normal(kx, (batch, seq, feat), dtype=jnp.float32)

    # Deterministic parameter init (matching torch Linear's uniform bound 1/sqrt(fan_in)).
    bound = 1.0 / (feat ** 0.5)
    w = jax.random.uniform(kw, (feat, feat), dtype=jnp.float32,
                           minval=-bound, maxval=bound)   # (out, in)
    b = jax.random.uniform(kb, (feat,), dtype=jnp.float32,
                           minval=-bound, maxval=bound)

    y = transformer_forward(x, w, b)
    jax.block_until_ready(y)

    # Sanity check against plain JAX reference.
    y_ref = x @ w.T + b
    assert y.shape == (batch, seq, feat)
    assert jnp.allclose(y, y_ref, atol=1e-4, rtol=1e-4)

    print("KERNEL_OK")
</pallas_src>

<mosaic_0001>
module attributes {stable_mosaic.version = 11 : i64} {
  func.func @_linear_kernel(%arg0: i32, %arg1: memref<8x384xf32, #tpu.memory_space<vmem>>, %arg2: memref<384x384xf32, #tpu.memory_space<vmem>>, %arg3: memref<8x384xf32, #tpu.memory_space<vmem>>, %arg4: memref<8x384xf32, #tpu.memory_space<vmem>>) attributes {dimension_semantics = [#tpu.dimension_semantics<parallel>], iteration_bounds = array<i64: 2>, scalar_prefetch = 0 : i64, scratch_operands = 0 : i64, tpu.core_type = #tpu.core_type<tc>, window_params = [{transform_indices = @transform_0, window_bounds = array<i64: 8, 384>}, {pipeline_mode = #tpu.pipeline_mode<synchronous>, transform_indices = @transform_1, window_bounds = array<i64: 384, 384>}, {pipeline_mode = #tpu.pipeline_mode<synchronous>, transform_indices = @transform_2, window_bounds = array<i64: 8, 384>}, {transform_indices = @transform_3, window_bounds = array<i64: 8, 384>}]} {
    %c0 = arith.constant 0 : index
    %c0_0 = arith.constant 0 : index
    %0 = vector.load %arg1[%c0, %c0_0] : memref<8x384xf32, #tpu.memory_space<vmem>>, vector<8x384xf32>
    %c0_1 = arith.constant 0 : index
    %c0_2 = arith.constant 0 : index
    %1 = vector.load %arg2[%c0_1, %c0_2] : memref<384x384xf32, #tpu.memory_space<vmem>>, vector<384x384xf32>
    %cst = arith.constant dense<0.000000e+00> : vector<8x384xf32>
    %2 = tpu.matmul %0, %1, %cst {dimension_numbers = #tpu.dot_dimension_numbers<[1], [0], [0], [1], [0, 0, 1, 1], [], []>} : vector<8x384xf32>, vector<384x384xf32>, vector<8x384xf32> -> vector<8x384xf32>
    %c0_3 = arith.constant 0 : index
    %c0_4 = arith.constant 0 : index
    %3 = vector.load %arg3[%c0_3, %c0_4] : memref<8x384xf32, #tpu.memory_space<vmem>>, vector<1x384xf32>
    %4 = vector.broadcast %3 : vector<1x384xf32> to vector<8x384xf32>
    %5 = arith.addf %2, %4 : vector<8x384xf32>
    %c0_5 = arith.constant 0 : index
    %c0_6 = arith.constant 0 : index
    %6 = vector.load %arg4[%c0_5, %c0_6] : memref<8x384xf32, #tpu.memory_space<vmem>>, vector<8x384xf32>
    tpu.vector_store %arg4[%c0_5, %c0_6], %5 {strides = array<i32>} : memref<8x384xf32, #tpu.memory_space<vmem>>, vector<8x384xf32>,
    return
  }
  func.func @transform_0(%arg0: i32) -> (i32, i32) {
    %c0_i32 = arith.constant 0 : i32
    %c0_i32_0 = arith.constant 0 : i32
    return %arg0, %c0_i32 : i32, i32
  }
  func.func @transform_1(%arg0: i32) -> (i32, i32) {
    %c0_i32 = arith.constant 0 : i32
    %c0_i32_0 = arith.constant 0 : i32
    %c0_i32_1 = arith.constant 0 : i32
    return %c0_i32, %c0_i32_0 : i32, i32
  }
  func.func @transform_2(%arg0: i32) -> (i32, i32) {
    %c0_i32 = arith.constant 0 : i32
    %c0_i32_0 = arith.constant 0 : i32
    %c0_i32_1 = arith.constant 0 : i32
    return %c0_i32, %c0_i32_0 : i32, i32
  }
  func.func @transform_3(%arg0: i32) -> (i32, i32) {
    %c0_i32 = arith.constant 0 : i32
    %c0_i32_0 = arith.constant 0 : i32
    return %arg0, %c0_i32 : i32, i32
  }
}

</mosaic_0001>

<llo_original>
// kernel: linear_pallas.1
$region0: #{linear_pallas.1}
  #allocation0 [shape = 'u32[]', space=smem, size = 0x4, offset = 0x4, fixed_abs, tag = 'smem constant byte address 0x4 - core index']
  #allocation1 [shape = 'u32[144,128]{1,0:T(1,128)}', space=vmem, size = 0x12000, scoped, tag = 'internal scratch']
  %s0 = inlined_call_operand.vmem [shape: f32[16,384], index: 0, kind: input, shape index: {}]
  %s1 = inlined_call_operand.vmem [shape: f32[384,384], index: 1, kind: input, shape index: {}]
  %s2 = inlined_call_operand.vmem [shape: f32[8,384], index: 2, kind: input, shape index: {}]
  %s3 = inlined_call_operand.hbm [shape: f32[16,384], index: 3, kind: output, shape index: {}]
  %s4 = sld [smem:[#allocation0]]
  $region45: #{linear_pallas.1} parent=0
    _
  %s6 = ssub.s32 1, %s4
  %s7 = scalar_select 0, %s6, %s4
  $region1: #{linear_pallas.1} parent=0
    #allocation2 [shape = 'u8[24576]{0}', space=vmem, size = 0x6000, scoped, tag = 'output window, operand 0']
    #allocation3 [shape = 's32[2]{0}', space=sflag, size = 0x8, scoped, tag = 'scoped memory for linear_pallas.1']
    %8 = vsyncpa [#allocation3], 0
    %s9 = scalar_lea.sflag [#allocation3], 1
    %10 = vsyncpa %s9, 0
    loop: start=0, step=1, limit=4
    $region2: #{linear_pallas.1} parent=1 // loop_pre_header
      _
    $region3: #{linear_pallas.1} parent=1 // loop_header
      %s12 = sphi 0, %s16
      %p13 = scmp.ge.s32.totalorder %s12, 4
      %s22 = sphi 0, %s24
      %s25 = sphi 0, %s22
      %s26 = sphi 0, %s25
      %s42 = sphi 0, %s26
      %s46 = sphi 0, %s46
      %s48 = sphi 0, %s46
      %s49 = sphi 0, %s48
      %s63 = sphi 0, %s49
      %s67 = sphi 0, %s67
      %s69 = sphi 0, %s67
      %s70 = sphi 0, %s69
      %s84 = sphi 0, %s70
      %s90 = sphi 0, %s92
      %s93 = sphi 0, %s90
      %s94 = sphi 0, %s93
      %s110 = sphi 0, %s94
    $region4: #{linear_pallas.1} parent=1 // loop_header_branch
      %15 = sbr.rel (%p13) target = $region8
    $region5: #{linear_pallas.1} parent=1 // loop_body
      %s17 = ssub.s32 %s12, 1
      %s18 = ssub.s32 %s12, 2
      %s19 = sadd.s32 %s12, 1
      %s20 = ssub.s32 %s12, %s19
      %p21 = scmp.eq.s32.totalorder %s20, 0
      %s23 = sadd.s32 %s22, 1
      %s24 = scalar_select %p21, %s22, %s23
      %p27 = pneg %p21
      %p28 = scmp.eq.s32.totalorder %s12, 1
      %p29 = por %p27, %p28
      %p30 = scmp.ne.s32.totalorder %s22, %s25
      %p31 = scmp.eq.s32.totalorder %s12, 0
      %p32 = por %p30, %p31
      %p33 = scmp.ne.s32.totalorder %s22, %s25
      %p34 = scmp.eq.s32.totalorder %s17, 1
      %p35 = por %p33, %p34
      %p36 = scmp.ne.s32.totalorder %s25, %s26
      %p37 = scmp.eq.s32.totalorder %s17, 0
      %p38 = por %p36, %p37
      %p39 = scmp.ne.s32.totalorder %s25, %s26
      %p40 = scmp.eq.s32.totalorder %s18, 1
      %p41 = por %p39, %p40
      %p43 = scmp.ne.s32.totalorder %s26, %s42
      %p44 = scmp.eq.s32.totalorder %s18, 0
      %p45 = por %p43, %p44
      %s47 = sadd.s32 %s46, 1
      %p50 = scmp.eq.s32.totalorder %s12, 1
      %p51 = scmp.ne.s32.totalorder %s46, %s48
      %p52 = scmp.eq.s32.totalorder %s12, 0
      %p53 = por %p51, %p52
      %p54 = scmp.ne.s32.totalorder %s46, %s48
      %p55 = scmp.eq.s32.totalorder %s17, 1
      %p56 = por %p54, %p55
      %p57 = scmp.ne.s32.totalorder %s48, %s49
      %p58 = scmp.eq.s32.totalorder %s17, 0
      %p59 = por %p57, %p58
      %p60 = scmp.ne.s32.totalorder %s48, %s49
      %p61 = scmp.eq.s32.totalorder %s18, 1
      %p62 = por %p60, %p61
      %p64 = scmp.ne.s32.totalorder %s49, %s63
      %p65 = scmp.eq.s32.totalorder %s18, 0
      %p66 = por %p64, %p65
      %s68 = sadd.s32 %s67, 1
      %p71 = scmp.eq.s32.totalorder %s12, 1
      %p72 = scmp.ne.s32.totalorder %s67, %s69
      %p73 = scmp.eq.s32.totalorder %s12, 0
      %p74 = por %p72, %p73
      %p75 = scmp.ne.s32.totalorder %s67, %s69
      %p76 = scmp.eq.s32.totalorder %s17, 1
      %p77 = por %p75, %p76
      %p78 = scmp.ne.s32.totalorder %s69, %s70
      %p79 = scmp.eq.s32.totalorder %s17, 0
      %p80 = por %p78, %p79
      %p81 = scmp.ne.s32.totalorder %s69, %s70
      %p82 = scmp.eq.s32.totalorder %s18, 1
      %p83 = por %p81, %p82
      %p85 = scmp.ne.s32.totalorder %s70, %s84
      %p86 = scmp.eq.s32.totalorder %s18, 0
      %p87 = por %p85, %p86
      %s88 = ssub.s32 %s12, %s19
      %p89 = scmp.eq.s32.totalorder %s88, 0
      %s91 = sadd.s32 %s90, 1
      %s92 = scalar_select %p89, %s90, %s91
      %p95 = pneg %p89
      %p96 = scmp.eq.s32.totalorder %s12, 1
      %p97 = por %p95, %p96
      %p98 = scmp.ne.s32.totalorder %s90, %s93
      %p99 = scmp.eq.s32.totalorder %s12, 0
      %p100 = por %p98, %p99
      %p101 = scmp.ne.s32.totalorder %s90, %s93
      %p102 = scmp.eq.s32.totalorder %s17, 1
      %p103 = por %p101, %p102
      %p104 = scmp.ne.s32.totalorder %s93, %s94
      %p105 = scmp.eq.s32.totalorder %s17, 0
      %p106 = por %p104, %p105
      %p107 = scmp.ne.s32.totalorder %s93, %s94
      %p108 = scmp.eq.s32.totalorder %s18, 1
      %p109 = por %p107, %p108
      %p111 = scmp.ne.s32.totalorder %s94, %s110
      %p112 = scmp.eq.s32.totalorder %s18, 0
      %p113 = por %p111, %p112
      %p114 = scmp.le.s32.totalorder 1, %s12
      %p115 = scmp.lt.s32.totalorder %s12, 3
      %p116 = pnand %p114, %p115
      %p117 = pneg %p116
      // Predicated region
      $region9: #{linear_pallas.1} parent=5 // pred_check
        _
      $region10: #{linear_pallas.1} parent=5 // pred_check_branch
        %119 = sbr.rel (%p116) target = $region12
      $region11: #{linear_pallas.1} parent=5 // pred_region
        %s120 = ssub.s32 %s12, 1
        // Predicated region
        $region13: #{linear_pallas.1} parent=11 // pred_check
          %p121 = pneg %p59
        $region14: #{linear_pallas.1} parent=11 // pred_check_branch
          %123 = sbr.rel (%p121) target = $region16
        $region15: #{linear_pallas.1} parent=11 // pred_region
          _
        $region16: #{linear_pallas.1} parent=11 // pred_fallthru
          _
        // Predicated region
        $region17: #{linear_pallas.1} parent=11 // pred_check
          %p124 = pneg %p80
        $region18: #{linear_pallas.1} parent=11 // pred_check_branch
          %126 = sbr.rel (%p124) target = $region20
        $region19: #{linear_pallas.1} parent=11 // pred_region
          _
        $region20: #{linear_pallas.1} parent=11 // pred_fallthru
          _
      $region12: #{linear_pallas.1} parent=5 // pred_fallthru
        _
      %p127 = scmp.lt.s32.totalorder %s12, 2
      // Predicated region
      $region21: #{linear_pallas.1} parent=5 // pred_check
        %p128 = pneg %p127
      $region22: #{linear_pallas.1} parent=5 // pred_check_branch
        %130 = sbr.rel (%p128) target = $region24
      $region23: #{linear_pallas.1} parent=5 // pred_region
        // Predicated region
        $region25: #{linear_pallas.1} parent=23 // pred_check
          %p131 = pneg %p32
        $region26: #{linear_pallas.1} parent=23 // pred_check_branch
          %133 = sbr.rel (%p131) target = $region28
        $region27: #{linear_pallas.1} parent=23 // pred_region
          %p134 = scmp.lt.s32.totalorder %s12, 1
          %s135 = scalar_select %p134, %s12, 1
          %s136 = smul.addr %s135, 3
          %s137 = smul.addr %s136, 8
          %s138 = scalar_lea.vmem %s0, %s137
        $region28: #{linear_pallas.1} parent=23 // pred_fallthru
          _
      $region24: #{linear_pallas.1} parent=5 // pred_fallthru
        _
      %p139 = scmp.le.s32.totalorder 1, %s12
      %p140 = scmp.lt.s32.totalorder %s12, 3
      %p141 = pnand %p139, %p140
      %p142 = pneg %p141
      // Predicated region
      $region29: #{linear_pallas.1} parent=5 // pred_check
        _
      $region30: #{linear_pallas.1} parent=5 // pred_check_branch
        %144 = sbr.rel (%p141) target = $region32
      $region31: #{linear_pallas.1} parent=5 // pred_region
        %s145 = ssub.s32 %s12, 1
        %p146 = scmp.lt.s32.totalorder %s17, 1
        %s147 = scalar_select %p146, %s17, 1
        %s148 = smul.addr %s147, 3
        %s149 = smul.addr %s148, 8
        %s150 = scalar_lea.vmem %s0, %s149
        %p151 = pneg %p38
        %p152 = pneg %p35
        %p153 = pneg %p59
        %p154 = pneg %p56
        %p155 = pneg %p80
        %p156 = pneg %p77
        %p157 = pneg %p106
        %p158 = pneg %p103
        %s159 = sand.u32 %s93, 1
        %s160 = scalar_lea.sflag [#allocation3], %s159
        %s161 = sand.u32 %s93, 1
        %s162 = smul.addr %s161, 24
        %s163 = scalar_lea.vmem [#allocation2], %s162
        %p164 = scmp.lt.s32.totalorder %s17, 1
        %s165 = scalar_select %p164, %s17, 1
        %s166 = smul.addr %s165, 3
        %s167 = smul.addr %s166, 8
        %s168 = scalar_lea.vmem %s0, %s167
        %v169 = vld [vmem:[%s168] sm:$0xff]
        %v170 = vld [vmem:[%s168 + $0x8] sm:$0xff]
        %v171 = vld [vmem:[%s168 + $0x10] sm:$0xff]
        %v172 = vld [vmem:[%s1] sm:$0xff]
        %v173 = vld [vmem:[%s1 + $0x8] sm:$0xff]
        %v174 = vld [vmem:[%s1 + $0x10] sm:$0xff]
        %v175 = vld [vmem:[%s1 + $0x18] sm:$0xff]
        %v176 = vld [vmem:[%s1 + $0x20] sm:$0xff]
        %v177 = vld [vmem:[%s1 + $0x28] sm:$0xff]
        %v178 = vld [vmem:[%s1 + $0x30] sm:$0xff]
        %v179 = vld [vmem:[%s1 + $0x38] sm:$0xff]
        %v180 = vld [vmem:[%s1 + $0x40] sm:$0xff]
        %v181 = vld [vmem:[%s1 + $0x48] sm:$0xff]
        %v182 = vld [vmem:[%s1 + $0x50] sm:$0xff]
        %v183 = vld [vmem:[%s1 + $0x58] sm:$0xff]
        %v184 = vld [vmem:[%s1 + $0x60] sm:$0xff]
        %v185 = vld [vmem:[%s1 + $0x68] sm:$0xff]
        %v186 = vld [vmem:[%s1 + $0x70] sm:$0xff]
        %v187 = vld [vmem:[%s1 + $0x78] sm:$0xff]
        %v188 = vld [vmem:[%s1 + $0x80] sm:$0xff]
        %v189 = vld [vmem:[%s1 + $0x88] sm:$0xff]
        %v190 = vld [vmem:[%s1 + $0x90] sm:$0xff]
        %v191 = vld [vmem:[%s1 + $0x98] sm:$0xff]
        %v192 = vld [vmem:[%s1 + $0xa0] sm:$0xff]
        %v193 = vld [vmem:[%s1 + $0xa8] sm:$0xff]
        %v194 = vld [vmem:[%s1 + $0xb0] sm:$0xff]
        %v195 = vld [vmem:[%s1 + $0xb8] sm:$0xff]
        %v196 = vld [vmem:[%s1 + $0xc0] sm:$0xff]
        %v197 = vld [vmem:[%s1 + $0xc8] sm:$0xff]
        %v198 = vld [vmem:[%s1 + $0xd0] sm:$0xff]
        %v199 = vld [vmem:[%s1 + $0xd8] sm:$0xff]
        %v200 = vld [vmem:[%s1 + $0xe0] sm:$0xff]
        %v201 = vld [vmem:[%s1 + $0xe8] sm:$0xff]
        %v202 = vld [vmem:[%s1 + $0xf0] sm:$0xff]
        %v203 = vld [vmem:[%s1 + $0xf8] sm:$0xff]
        %v204 = vld [vmem:[%s1 + $0x100] sm:$0xff]
        %v205 = vld [vmem:[%s1 + $0x108] sm:$0xff]
        %v206 = vld [vmem:[%s1 + $0x110] sm:$0xff]
        %v207 = vld [vmem:[%s1 + $0x118] sm:$0xff]
        %v208 = vld [vmem:[%s1 + $0x120] sm:$0xff]
        %v209 = vld [vmem:[%s1 + $0x128] sm:$0xff]
        %v210 = vld [vmem:[%s1 + $0x130] sm:$0xff]
        %v211 = vld [vmem:[%s1 + $0x138] sm:$0xff]
        %v212 = vld [vmem:[%s1 + $0x140] sm:$0xff]
        %v213 = vld [vmem:[%s1 + $0x148] sm:$0xff]
        %v214 = vld [vmem:[%s1 + $0x150] sm:$0xff]
        %v215 = vld [vmem:[%s1 + $0x158] sm:$0xff]
        %v216 = vld [vmem:[%s1 + $0x160] sm:$0xff]
        %v217 = vld [vmem:[%s1 + $0x168] sm:$0xff]
        %v218 = vld [vmem:[%s1 + $0x170] sm:$0xff]
        %v219 = vld [vmem:[%s1 + $0x178] sm:$0xff]
        %v220 = vld [vmem:[%s1 + $0x180] sm:$0xff]
        %v221 = vld [vmem:[%s1 + $0x188] sm:$0xff]
        %v222 = vld [vmem:[%s1 + $0x190] sm:$0xff]
        %v223 = vld [vmem:[%s1 + $0x198] sm:$0xff]
        %v224 = vld [vmem:[%s1 + $0x1a0] sm:$0xff]
        %v225 = vld [vmem:[%s1 + $0x1a8] sm:$0xff]
        %v226 = vld [vmem:[%s1 + $0x1b0] sm:$0xff]
        %v227 = vld [vmem:[%s1 + $0x1b8] sm:$0xff]
        %v228 = vld [vmem:[%s1 + $0x1c0] sm:$0xff]
        %v229 = vld [vmem:[%s1 + $0x1c8] sm:$0xff]
        %v230 = vld [vmem:[%s1 + $0x1d0] sm:$0xff]
        %v231 = vld [vmem:[%s1 + $0x1d8] sm:$0xff]
        %v232 = vld [vmem:[%s1 + $0x1e0] sm:$0xff]
        %v233 = vld [vmem:[%s1 + $0x1e8] sm:$0xff]
        %v234 = vld [vmem:[%s1 + $0x1f0] sm:$0xff]
        %v235 = vld [vmem:[%s1 + $0x1f8] sm:$0xff]
        %v236 = vld [vmem:[%s1 + $0x200] sm:$0xff]
        %v237 = vld [vmem:[%s1 + $0x208] sm:$0xff]
        %v238 = vld [vmem:[%s1 + $0x210] sm:$0xff]
        %v239 = vld [vmem:[%s1 + $0x218] sm:$0xff]
        %v240 = vld [vmem:[%s1 + $0x220] sm:$0xff]
        %v241 = vld [vmem:[%s1 + $0x228] sm:$0xff]
        %v242 = vld [vmem:[%s1 + $0x230] sm:$0xff]
        %v243 = vld [vmem:[%s1 + $0x238] sm:$0xff]
        %v244 = vld [vmem:[%s1 + $0x240] sm:$0xff]
        %v245 = vld [vmem:[%s1 + $0x248] sm:$0xff]
        %v246 = vld [vmem:[%s1 + $0x250] sm:$0xff]
        %v247 = vld [vmem:[%s1 + $0x258] sm:$0xff]
        %v248 = vld [vmem:[%s1 + $0x260] sm:$0xff]
        %v249 = vld [vmem:[%s1 + $0x268] sm:$0xff]
        %v250 = vld [vmem:[%s1 + $0x270] sm:$0xff]
        %v251 = vld [vmem:[%s1 + $0x278] sm:$0xff]
        %v252 = vld [vmem:[%s1 + $0x280] sm:$0xff]
        %v253 = vld [vmem:[%s1 + $0x288] sm:$0xff]
        %v254 = vld [vmem:[%s1 + $0x290] sm:$0xff]
        %v255 = vld [vmem:[%s1 + $0x298] sm:$0xff]
        %v256 = vld [vmem:[%s1 + $0x2a0] sm:$0xff]
        %v257 = vld [vmem:[%s1 + $0x2a8] sm:$0xff]
        %v258 = vld [vmem:[%s1 + $0x2b0] sm:$0xff]
        %v259 = vld [vmem:[%s1 + $0x2b8] sm:$0xff]
        %v260 = vld [vmem:[%s1 + $0x2c0] sm:$0xff]
        %v261 = vld [vmem:[%s1 + $0x2c8] sm:$0xff]
        %v262 = vld [vmem:[%s1 + $0x2d0] sm:$0xff]
        %v263 = vld [vmem:[%s1 + $0x2d8] sm:$0xff]
        %v264 = vld [vmem:[%s1 + $0x2e0] sm:$0xff]
        %v265 = vld [vmem:[%s1 + $0x2e8] sm:$0xff]
        %v266 = vld [vmem:[%s1 + $0x2f0] sm:$0xff]
        %v267 = vld [vmem:[%s1 + $0x2f8] sm:$0xff]
        %v268 = vld [vmem:[%s1 + $0x300] sm:$0xff]
        %v269 = vld [vmem:[%s1 + $0x308] sm:$0xff]
        %v270 = vld [vmem:[%s1 + $0x310] sm:$0xff]
        %v271 = vld [vmem:[%s1 + $0x318] sm:$0xff]
        %v272 = vld [vmem:[%s1 + $0x320] sm:$0xff]
        %v273 = vld [vmem:[%s1 + $0x328] sm:$0xff]
        %v274 = vld [vmem:[%s1 + $0x330] sm:$0xff]
        %v275 = vld [vmem:[%s1 + $0x338] sm:$0xff]
        %v276 = vld [vmem:[%s1 + $0x340] sm:$0xff]
        %v277 = vld [vmem:[%s1 + $0x348] sm:$0xff]
        %v278 = vld [vmem:[%s1 + $0x350] sm:$0xff]
        %v279 = vld [vmem:[%s1 + $0x358] sm:$0xff]
        %v280 = vld [vmem:[%s1 + $0x360] sm:$0xff]
        %v281 = vld [vmem:[%s1 + $0x368] sm:$0xff]
        %v282 = vld [vmem:[%s1 + $0x370] sm:$0xff]
        %v283 = vld [vmem:[%s1 + $0x378] sm:$0xff]
        %v284 = vld [vmem:[%s1 + $0x380] sm:$0xff]
        %v285 = vld [vmem:[%s1 + $0x388] sm:$0xff]
        %v286 = vld [vmem:[%s1 + $0x390] sm:$0xff]
        %v287 = vld [vmem:[%s1 + $0x398] sm:$0xff]
        %v288 = vld [vmem:[%s1 + $0x3a0] sm:$0xff]
        %v289 = vld [vmem:[%s1 + $0x3a8] sm:$0xff]
        %v290 = vld [vmem:[%s1 + $0x3b0] sm:$0xff]
        %v291 = vld [vmem:[%s1 + $0x3b8] sm:$0xff]
        %v292 = vld [vmem:[%s1 + $0x3c0] sm:$0xff]
        %v293 = vld [vmem:[%s1 + $0x3c8] sm:$0xff]
        %v294 = vld [vmem:[%s1 + $0x3d0] sm:$0xff]
        %v295 = vld [vmem:[%s1 + $0x3d8] sm:$0xff]
        %v296 = vld [vmem:[%s1 + $0x3e0] sm:$0xff]
        %v297 = vld [vmem:[%s1 + $0x3e8] sm:$0xff]
        %v298 = vld [vmem:[%s1 + $0x3f0] sm:$0xff]
        %v299 = vld [vmem:[%s1 + $0x3f8] sm:$0xff]
        %v300 = vld [vmem:[%s1 + $0x400] sm:$0xff]
        %v301 = vld [vmem:[%s1 + $0x408] sm:$0xff]
        %v302 = vld [vmem:[%s1 + $0x410] sm:$0xff]
        %v303 = vld [vmem:[%s1 + $0x418] sm:$0xff]
        %v304 = vld [vmem:[%s1 + $0x420] sm:$0xff]
        %v305 = vld [vmem:[%s1 + $0x428] sm:$0xff]
        %v306 = vld [vmem:[%s1 + $0x430] sm:$0xff]
        %v307 = vld [vmem:[%s1 + $0x438] sm:$0xff]
        %v308 = vld [vmem:[%s1 + $0x440] sm:$0xff]
        %v309 = vld [vmem:[%s1 + $0x448] sm:$0xff]
        %v310 = vld [vmem:[%s1 + $0x450] sm:$0xff]
        %v311 = vld [vmem:[%s1 + $0x458] sm:$0xff]
        %v312 = vld [vmem:[%s1 + $0x460] sm:$0xff]
        %v313 = vld [vmem:[%s1 + $0x468] sm:$0xff]
        %v314 = vld [vmem:[%s1 + $0x470] sm:$0xff]
        %v315 = vld [vmem:[%s1 + $0x478] sm:$0xff]
        %v316 = vld [vmem:[%s2] ss:$8 sm:$0x7]
        %v318 = vlaneseq
        %v319 = vshrl.u32 %v318, 7
        %v320 = vsub.s32 0, %v319
        %v321 = vrot.slane %v316, %v320
        %v322 = vlaneseq
        %v323 = vshrl.u32 %v322, 7
        %v324 = vsub.s32 1, %v323
        %v325 = vrot.slane %v316, %v324
        %v326 = vlaneseq
        %v327 = vshrl.u32 %v326, 7
        %v328 = vsub.s32 2, %v327
        %v329 = vrot.slane %v316, %v328
        %333 = vmatprep.subr.mxu0 %v173
        %334 = vmatpush1.msra.mxu0 %v172
        %335 = vmatprep.subr.mxu0 %v176
        %336 = vmatpush1.msra.mxu0 %v175
        %337 = vmatprep.subr.mxu0 %v179
        %338 = vmatpush1.msra.mxu0 %v178
        %339 = vmatprep.subr.mxu0 %v182
        %340 = vmatpush1.msra.mxu0 %v181
        %341 = vmatprep.subr.mxu0 %v185
        %342 = vmatpush1.msra.mxu0 %v184
        %343 = vmatprep.subr.mxu0 %v188
        %344 = vmatpush1.msra.mxu0 %v187
        %345 = vmatprep.subr.mxu0 %v191
        %346 = vmatpush1.msra.mxu0 %v190
        %347 = vmatprep.subr.mxu0 %v194
        %348 = vmatpush1.msra.mxu0 %v193
        %349 = vmatprep.subr.mxu0 %v197
        %350 = vmatpush1.msra.mxu0 %v196
        %351 = vmatprep.subr.mxu0 %v200
        %352 = vmatpush1.msra.mxu0 %v199
        %353 = vmatprep.subr.mxu0 %v203
        %354 = vmatpush1.msra.mxu0 %v202
        %355 = vmatprep.subr.mxu0 %v206
        %356 = vmatpush1.msra.mxu0 %v205
        %357 = vmatprep.subr.mxu0 %v209
        %358 = vmatpush1.msra.mxu0 %v208
        %359 = vmatprep.subr.mxu0 %v212
        %360 = vmatpush1.msra.mxu0 %v211
        %361 = vmatprep.subr.mxu0 %v215
        %362 = vmatpush1.msra.mxu0 %v214
        %363 = vmatprep.subr.mxu0 %v218
        %364 = vmatpush1.msra.mxu0 %v217
        %365 = vmatprep.subr.mxu0 %v221
        %366 = vmatpush1.msra.mxu0 %v220
        %367 = vmatprep.subr.mxu0 %v224
        %368 = vmatpush1.msra.mxu0 %v223
        %369 = vmatprep.subr.mxu0 %v227
        %370 = vmatpush1.msra.mxu0 %v226
        %371 = vmatprep.subr.mxu0 %v230
        %372 = vmatpush1.msra.mxu0 %v229
        %373 = vmatprep.subr.mxu0 %v233
        %374 = vmatpush1.msra.mxu0 %v232
        %375 = vmatprep.subr.mxu0 %v236
        %376 = vmatpush1.msra.mxu0 %v235
        %377 = vmatprep.subr.mxu0 %v239
        %378 = vmatpush1.msra.mxu0 %v238
        %379 = vmatprep.subr.mxu0 %v242
        %380 = vmatpush1.msra.mxu0 %v241
        %381 = vmatprep.subr.mxu0 %v245
        %382 = vmatpush1.msra.mxu0 %v244
        %383 = vmatprep.subr.mxu0 %v248
        %384 = vmatpush1.msra.mxu0 %v247
        %385 = vmatprep.subr.mxu0 %v251
        %386 = vmatpush1.msra.mxu0 %v250
        %387 = vmatprep.subr.mxu0 %v254
        %388 = vmatpush1.msra.mxu0 %v253
        %389 = vmatprep.subr.mxu0 %v257
        %390 = vmatpush1.msra.mxu0 %v256
        %391 = vmatprep.subr.mxu0 %v260
        %392 = vmatpush1.msra.mxu0 %v259
        %393 = vmatprep.subr.mxu0 %v263
        %394 = vmatpush1.msra.mxu0 %v262
        %395 = vmatprep.subr.mxu0 %v266
        %396 = vmatpush1.msra.mxu0 %v265
        %397 = vmatprep.mubr.f32.mxu0 %v170
        %398 = vmatmul.mubr.f32.gmra.mrb[0].mxu0 %v169
        %v399 = vpop.f32.mrb[0].mxu0
        %v400 = vadd.f32 %v321, %v399
        %v401 = vpop.f32.mrb[0].mxu0
        %v402 = vadd.f32 %v325, %v401
        %403 = vdwg.mxu0
        %404 = vmatprep.subr.mxu0 %v269
        %405 = vmatpush1.msra.mxu0 %v268
        %406 = vmatprep.subr.mxu0 %v272
        %407 = vmatpush1.msra.mxu0 %v271
        %408 = vmatprep.subr.mxu0 %v275
        %409 = vmatpush1.msra.mxu0 %v274
        %410 = vmatprep.subr.mxu0 %v278
        %411 = vmatpush1.msra.mxu0 %v277
        %412 = vmatprep.subr.mxu0 %v281
        %413 = vmatpush1.msra.mxu0 %v280
        %414 = vmatprep.subr.mxu0 %v284
        %415 = vmatpush1.msra.mxu0 %v283
        %416 = vmatprep.subr.mxu0 %v287
        %417 = vmatpush1.msra.mxu0 %v286
        %418 = vmatprep.subr.mxu0 %v290
        %419 = vmatpush1.msra.mxu0 %v289
        %420 = vmatprep.subr.mxu0 %v293
        %421 = vmatpush1.msra.mxu0 %v292
        %422 = vmatprep.subr.mxu0 %v296
        %423 = vmatpush1.msra.mxu0 %v295
        %424 = vmatprep.subr.mxu0 %v299
        %425 = vmatpush1.msra.mxu0 %v298
        %426 = vmatprep.subr.mxu0 %v302
        %427 = vmatpush1.msra.mxu0 %v301
        %428 = vmatprep.subr.mxu0 %v305
        %429 = vmatpush1.msra.mxu0 %v304
        %430 = vmatprep.subr.mxu0 %v308
        %431 = vmatpush1.msra.mxu0 %v307
        %432 = vmatprep.subr.mxu0 %v311
        %433 = vmatpush1.msra.mxu0 %v310
        %434 = vmatprep.subr.mxu0 %v314
        %435 = vmatpush1.msra.mxu0 %v313
        %436 = vmatprep.subr.mxu0 0.0
        %437 = vmatpush1.msra.mxu0 0.0
        %438 = vmatprep.subr.mxu0 0.0
        %439 = vmatpush1.msra.mxu0 0.0
        %440 = vmatprep.subr.mxu0 0.0
        %441 = vmatpush1.msra.mxu0 0.0
        %442 = vmatprep.subr.mxu0 0.0
        %443 = vmatpush1.msra.mxu0 0.0
        %444 = vmatprep.subr.mxu0 0.0
        %445 = vmatpush1.msra.mxu0 0.0
        %446 = vmatprep.subr.mxu0 0.0
        %447 = vmatpush1.msra.mxu0 0.0
        %448 = vmatprep.subr.mxu0 0.0
        %449 = vmatpush1.msra.mxu0 0.0
        %450 = vmatprep.subr.mxu0 0.0
        %451 = vmatpush1.msra.mxu0 0.0
        %452 = vmatprep.subr.mxu0 0.0
        %453 = vmatpush1.msra.mxu0 0.0
        %454 = vmatprep.subr.mxu0 0.0
        %455 = vmatpush1.msra.mxu0 0.0
        %456 = vmatprep.subr.mxu0 0.0
        %457 = vmatpush1.msra.mxu0 0.0
        %458 = vmatprep.subr.mxu0 0.0
        %459 = vmatpush1.msra.mxu0 0.0
        %460 = vmatprep.subr.mxu0 0.0
        %461 = vmatpush1.msra.mxu0 0.0
        %462 = vmatprep.subr.mxu0 0.0
        %463 = vmatpush1.msra.mxu0 0.0
        %464 = vmatprep.subr.mxu0 0.0
        %465 = vmatpush1.msra.mxu0 0.0
        %466 = vmatprep.subr.mxu0 0.0
        %467 = vmatpush1.msra.mxu0 0.0
        %468 = vmatprep.mubr.f32.mxu0 0.0
        %469 = vmatmul.mubr.f32.gmra.mrb[0].mxu0 %v171
        %v470 = vpop.f32.mrb[0].mxu0
        %v471 = vadd.f32 %v400, %v470
        %v472 = vpop.f32.mrb[0].mxu0
        %v473 = vadd.f32 %v402, %v472
        %474 = vdwg.mxu0
        %475 = vmatprep.subr.mxu0 0.0
        %476 = vmatpush1.msra.mxu0 %v174
        %477 = vmatprep.subr.mxu0 0.0
        %478 = vmatpush1.msra.mxu0 %v177
        %479 = vmatprep.subr.mxu0 0.0
        %480 = vmatpush1.msra.mxu0 %v180
        %481 = vmatprep.subr.mxu0 0.0
        %482 = vmatpush1.msra.mxu0 %v183
        %483 = vmatprep.subr.mxu0 0.0
        %484 = vmatpush1.msra.mxu0 %v186
        %485 = vmatprep.subr.mxu0 0.0
        %486 = vmatpush1.msra.mxu0 %v189
        %487 = vmatprep.subr.mxu0 0.0
        %488 = vmatpush1.msra.mxu0 %v192
        %489 = vmatprep.subr.mxu0 0.0
        %490 = vmatpush1.msra.mxu0 %v195
        %491 = vmatprep.subr.mxu0 0.0
        %492 = vmatpush1.msra.mxu0 %v198
        %493 = vmatprep.subr.mxu0 0.0
        %494 = vmatpush1.msra.mxu0 %v201
        %495 = vmatprep.subr.mxu0 0.0
        %496 = vmatpush1.msra.mxu0 %v204
        %497 = vmatprep.subr.mxu0 0.0
        %498 = vmatpush1.msra.mxu0 %v207
        %499 = vmatprep.subr.mxu0 0.0
        %500 = vmatpush1.msra.mxu0 %v210
        %501 = vmatprep.subr.mxu0 0.0
        %502 = vmatpush1.msra.mxu0 %v213
        %503 = vmatprep.subr.mxu0 0.0
        %504 = vmatpush1.msra.mxu0 %v216
        %505 = vmatprep.subr.mxu0 0.0
        %506 = vmatpush1.msra.mxu0 %v219
        %507 = vmatprep.subr.mxu0 0.0
        %508 = vmatpush1.msra.mxu0 %v222
        %509 = vmatprep.subr.mxu0 0.0
        %510 = vmatpush1.msra.mxu0 %v225
        %511 = vmatprep.subr.mxu0 0.0
        %512 = vmatpush1.msra.mxu0 %v228
        %513 = vmatprep.subr.mxu0 0.0
        %514 = vmatpush1.msra.mxu0 %v231
        %515 = vmatprep.subr.mxu0 0.0
        %516 = vmatpush1.msra.mxu0 %v234
        %517 = vmatprep.subr.mxu0 0.0
        %518 = vmatpush1.msra.mxu0 %v237
        %519 = vmatprep.subr.mxu0 0.0
        %520 = vmatpush1.msra.mxu0 %v240
        %521 = vmatprep.subr.mxu0 0.0
        %522 = vmatpush1.msra.mxu0 %v243
        %523 = vmatprep.subr.mxu0 0.0
        %524 = vmatpush1.msra.mxu0 %v246
        %525 = vmatprep.subr.mxu0 0.0
        %526 = vmatpush1.msra.mxu0 %v249
        %527 = vmatprep.subr.mxu0 0.0
        %528 = vmatpush1.msra.mxu0 %v252
        %529 = vmatprep.subr.mxu0 0.0
        %530 = vmatpush1.msra.mxu0 %v255
        %531 = vmatprep.subr.mxu0 0.0
        %532 = vmatpush1.msra.mxu0 %v258
        %533 = vmatprep.subr.mxu0 0.0
        %534 = vmatpush1.msra.mxu0 %v261
        %535 = vmatprep.subr.mxu0 0.0
        %536 = vmatpush1.msra.mxu0 %v264
        %537 = vmatprep.subr.mxu0 0.0
        %538 = vmatpush1.msra.mxu0 %v267
        %539 = vmatprep.mubr.f32.mxu0 %v170
        %540 = vmatmul.mubr.f32.gmra.mrb[0].mxu0 %v169
        %v541 = vpop.f32.mrb[0].mxu0
        %v542 = vadd.f32 %v329, %v541
        %v543 = vpop.f32.mrb[0].mxu0
        %544 = vdwg.mxu0
        %545 = vmatprep.subr.mxu0 0.0
        %546 = vmatpush1.msra.mxu0 %v270
        %547 = vmatprep.subr.mxu0 0.0
        %548 = vmatpush1.msra.mxu0 %v273
        %549 = vmatprep.subr.mxu0 0.0
        %550 = vmatpush1.msra.mxu0 %v276
        %551 = vmatprep.subr.mxu0 0.0
        %552 = vmatpush1.msra.mxu0 %v279
        %553 = vmatprep.subr.mxu0 0.0
        %554 = vmatpush1.msra.mxu0 %v282
        %555 = vmatprep.subr.mxu0 0.0
        %556 = vmatpush1.msra.mxu0 %v285
        %557 = vmatprep.subr.mxu0 0.0
        %558 = vmatpush1.msra.mxu0 %v288
        %559 = vmatprep.subr.mxu0 0.0
        %560 = vmatpush1.msra.mxu0 %v291
        %561 = vmatprep.subr.mxu0 0.0
        %562 = vmatpush1.msra.mxu0 %v294
        %563 = vmatprep.subr.mxu0 0.0
        %564 = vmatpush1.msra.mxu0 %v297
        %565 = vmatprep.subr.mxu0 0.0
        %566 = vmatpush1.msra.mxu0 %v300
        %567 = vmatprep.subr.mxu0 0.0
        %568 = vmatpush1.msra.mxu0 %v303
        %569 = vmatprep.subr.mxu0 0.0
        %570 = vmatpush1.msra.mxu0 %v306
        %571 = vmatprep.subr.mxu0 0.0
        %572 = vmatpush1.msra.mxu0 %v309
        %573 = vmatprep.subr.mxu0 0.0
        %574 = vmatpush1.msra.mxu0 %v312
        %575 = vmatprep.subr.mxu0 0.0
        %576 = vmatpush1.msra.mxu0 %v315
        %577 = vmatprep.subr.mxu0 0.0
        %578 = vmatpush1.msra.mxu0 0.0
        %579 = vmatprep.subr.mxu0 0.0
        %580 = vmatpush1.msra.mxu0 0.0
        %581 = vmatprep.subr.mxu0 0.0
        %582 = vmatpush1.msra.mxu0 0.0
        %583 = vmatprep.subr.mxu0 0.0
        %584 = vmatpush1.msra.mxu0 0.0
        %585 = vmatprep.subr.mxu0 0.0
        %586 = vmatpush1.msra.mxu0 0.0
        %587 = vmatprep.subr.mxu0 0.0
        %588 = vmatpush1.msra.mxu0 0.0
        %589 = vmatprep.subr.mxu0 0.0
        %590 = vmatpush1.msra.mxu0 0.0
        %591 = vmatprep.subr.mxu0 0.0
        %592 = vmatpush1.msra.mxu0 0.0
        %593 = vmatprep.subr.mxu0 0.0
        %594 = vmatpush1.msra.mxu0 0.0
        %595 = vmatprep.subr.mxu0 0.0
        %596 = vmatpush1.msra.mxu0 0.0
        %597 = vmatprep.subr.mxu0 0.0
        %598 = vmatpush1.msra.mxu0 0.0
        %599 = vmatprep.subr.mxu0 0.0
        %600 = vmatpush1.msra.mxu0 0.0
        %601 = vmatprep.subr.mxu0 0.0
        %602 = vmatpush1.msra.mxu0 0.0
        %603 = vmatprep.subr.mxu0 0.0
        %604 = vmatpush1.msra.mxu0 0.0
        %605 = vmatprep.subr.mxu0 0.0
        %606 = vmatpush1.msra.mxu0 0.0
        %607 = vmatprep.subr.mxu0 0.0
        %608 = vmatpush1.msra.mxu0 0.0
        %609 = vmatprep.mubr.f32.mxu0 0.0
        %610 = vmatmul.mubr.f32.gmra.mrb[0].mxu0 %v171
        %v611 = vpop.f32.mrb[0].mxu0
        %v612 = vadd.f32 %v542, %v611
        %v613 = vpop.f32.mrb[0].mxu0
        %614 = vdwg.mxu0
        %615 = vst [vmem:[%s163] sm:$0xff] %v471
        %616 = vst [vmem:[%s163 + $0x8] sm:$0xff] %v473
        %617 = vst [vmem:[%s163 + $0x10] sm:$0xff] %v612
        %s618 = sand.u32 %s93, 1
        %s619 = scalar_lea.sflag [#allocation3], %s618
        %s620 = sand.u32 %s93, 1
        %s621 = smul.addr %s620, 24
        %s622 = scalar_lea.vmem [#allocation2], %s621
        // Predicated region
        $region33: #{linear_pallas.1} parent=31 // pred_check
          %p623 = pneg %p103
        $region34: #{linear_pallas.1} parent=31 // pred_check_branch
          %625 = sbr.rel (%p623) target = $region36
        $region35: #{linear_pallas.1} parent=31 // pred_region
          %s627 = ssub.s32 384, 384
          %628 = vsyncadd %s619, %s627
          %s629 = smul.addr %s17, 3
          %s630 = smul.addr %s629, 128
          %s631 = scalar_lea.hbm %s3, %s630
          %s633 = sshll.u32 %s622, 4
          %s634 = int_to_ptr.vmem [resolvable:$true] %s633
          %636 = dma.vmem_to_hbm [thread:$0]  %s634, 384, %s631, %s619
        $region36: #{linear_pallas.1} parent=31 // pred_fallthru
          _
      $region32: #{linear_pallas.1} parent=5 // pred_fallthru
        _
      %p637 = scmp.le.s32.totalorder 2, %s12
      // Predicated region
      $region37: #{linear_pallas.1} parent=5 // pred_check
        %p638 = pneg %p637
      $region38: #{linear_pallas.1} parent=5 // pred_check_branch
        %640 = sbr.rel (%p638) target = $region40
      $region39: #{linear_pallas.1} parent=5 // pred_region
        %s641 = ssub.s32 %s12, 2
        // Predicated region
        $region41: #{linear_pallas.1} parent=39 // pred_check
          %p642 = pneg %p109
        $region42: #{linear_pallas.1} parent=39 // pred_check_branch
          %644 = sbr.rel (%p642) target = $region44
        $region43: #{linear_pallas.1} parent=39 // pred_region
          %s645 = sand.u32 %s94, 1
          %s646 = scalar_lea.sflag [#allocation3], %s645
          %s647 = sand.u32 %s94, 1
          %s648 = smul.addr %s647, 24
          %s649 = scalar_lea.vmem [#allocation2], %s648
          %650 = dma.done %s646, 384
        $region44: #{linear_pallas.1} parent=39 // pred_fallthru
          _
      $region40: #{linear_pallas.1} parent=5 // pred_fallthru
        _
    $region6: #{linear_pallas.1} parent=1 // loop_footer
      %s16 = sadd.s32 1, %s12
    $region7: #{linear_pallas.1} parent=1 // loop_footer_branch
      %11 = sbr.rel target = $region3
    $region8: #{linear_pallas.1} parent=1 // loop_exit
      _
    %651 = vsyncpa [#allocation3], 1
    %s652 = scalar_lea.sflag [#allocation3], 1
    %653 = vsyncpa %s652, 1

</llo_original>
